<compile_context>
chip_gen: v5e
topology: v5e:2x2
jax: 0.10.0
libtpu: 0.0.40
codegen_flags: <defaults>
</compile_context>

<pallas_src>
import math
import functools

import jax
import jax.numpy as jnp
from jax.experimental import pallas as pl
from jax.experimental.pallas import tpu as pltpu


def _arcface_kernel(feats_ref, w_ref, labels_ref, out_ref, wbf_ref, colscale_ref, *,
                    cos_margin, sin_margin, min_cos_theta, margin_am, scale):
    # feats_ref   : (B, D)        bfloat16  (full batch, resident)
    # w_ref       : (TC, D)       float32   (raw weight tile for this class tile)
    # labels_ref  : (B, 1)        int32     (full batch, resident)
    # out_ref     : (TB, TC)      float32
    # wbf_ref     : (TC, D)       bfloat16  scratch (bf16 copy of the weight tile)
    # colscale_ref: (1, TC)       float32   scratch (scale / ||w_c||)
    j = pl.program_id(0)          # class tile (outer, "parallel")
    i = pl.program_id(1)          # batch tile (inner, "arbitrary")
    block_b, block_c = out_ref.shape

    # Once per class tile: cast the resident f32 weight tile to bf16 and
    # compute scale * inverse L2 norm per class.  The (1, TC) orientation comes
    # from an MXU contraction with a ones row vector, so the main path can
    # column-scale its (TB, TC) matmul output with a plain broadcast.
    @pl.when(i == 0)
    def _():
        w = w_ref[...]                                           # (TC, D) f32
        wbf_ref[...] = w.astype(jnp.bfloat16)
        ones = jnp.ones((1, w.shape[1]), dtype=jnp.float32)      # (1, D)
        sumsq = jax.lax.dot_general(
            ones, w * w,
            dimension_numbers=(((1,), (1,)), ((), ())),
            preferred_element_type=jnp.float32)                  # (1, TC)
        # F.normalize semantics: w / max(||w||_2, 1e-12); scale folded in.
        colscale_ref[...] = scale / jnp.maximum(jnp.sqrt(sumsq), 1e-12)

    # Current batch tile of the resident feats / labels.
    row0 = pl.multiple_of(i * block_b, block_b)
    feats_tile = feats_ref[pl.ds(row0, block_b), :]              # (TB, D) bf16
    labels_tile = labels_ref[pl.ds(row0, block_b), :]            # (TB, 1) int32

    # MXU: contract D of both operands -> (TB, TC); bf16 inputs, f32 accumulate.
    raw = jax.lax.dot_general(
        feats_tile, wbf_ref[...],
        dimension_numbers=(((1,), (1,)), ((), ())),
        preferred_element_type=jnp.float32)

    # scaled == scale * cos_theta, clipped.  (scale is a power of two by
    # default, so this is numerically identical to clip(cos,-1,1)*scale.)
    scaled = jnp.clip(raw * colscale_ref[...], -scale, scale)

    # One-hot of the ABSOLUTE class index inside this class tile.
    rel_labels = labels_tile - j * block_c                       # (TB, 1)
    col_ids = jax.lax.broadcasted_iota(jnp.int32, scaled.shape, 1)
    onehot = col_ids == rel_labels                               # (TB, TC)

    # Gather the per-row label cosine (0 if the label is not in this class
    # tile -- in that case the final select never uses the margin value).
    label_scaled = jnp.sum(jnp.where(onehot, scaled, 0.0), axis=1,
                           keepdims=True)                        # (TB, 1)
    cos_l = label_scaled * (1.0 / scale)
    # Additive-angular-margin math only on the (TB, 1) label column.
    sin_l = jnp.sqrt(jnp.maximum(1.0 - cos_l * cos_l, 0.0))
    cos_m = cos_l * cos_margin - sin_l * sin_margin
    cos_m = jnp.where(cos_l > min_cos_theta, cos_m, cos_l - margin_am)

    out_ref[...] = jnp.where(onehot, cos_m * scale, scaled).astype(out_ref.dtype)


def arcface_forward(feats, weight, labels, *,
                    margin_arc=0.5, margin_am=0.0, scale=64.0,
                    block_b=None, block_c=None):
    """feats: (B, D) f32, weight: (C, D) f32, labels: (B,) int -> (B, C) f32."""
    B, D = feats.shape
    C, D2 = weight.shape
    assert D2 == D, "feat_dim mismatch between feats and weight"

    # MXU/HBM-friendly defaults (review: amortize per-step overhead, fill the
    # 256-wide MXU on v6e/v7x, stay under v7x's VMEM budget).
    if block_b is None:
        block_b = min(B, 256)
    if block_c is None:
        block_c = min(C, 1024)
    block_b = min(block_b, B)
    block_c = min(block_c, C)

    # Shape guards: keep tiles friendly to the (8/16, 128) vreg tiling.
    assert D % 128 == 0, "feat_dim must be a multiple of 128 (pad it upstream)"
    assert B % block_b == 0 and C % block_c == 0, "B/C must divide the tile sizes"
    assert block_b % 16 == 0 or block_b == B, "block_b should be a multiple of 16"
    assert block_c % 128 == 0 or block_c == C, "block_c should be a multiple of 128"

    labels2d = labels.reshape(B, 1).astype(jnp.int32)
    feats_bf = feats.astype(jnp.bfloat16)      # (B, D) only -- negligible traffic

    nc = C // block_c
    nb = B // block_b

    kernel = functools.partial(
        _arcface_kernel,
        cos_margin=math.cos(margin_arc),
        sin_margin=math.sin(margin_arc),
        min_cos_theta=math.cos(math.pi - margin_arc),
        margin_am=margin_am,
        scale=scale,
    )

    return pl.pallas_call(
        kernel,
        out_shape=jax.ShapeDtypeStruct((B, C), jnp.float32),
        grid_spec=pltpu.PrefetchScalarGridSpec(
            num_scalar_prefetch=0,
            # Class tiles OUTER, batch tiles INNER: the weight tile is DMA'd
            # from HBM exactly once per class tile and revisited across the
            # whole inner batch loop.
            grid=(nc, nb),
            in_specs=[
                pl.BlockSpec((B, D), lambda j, i: (0, 0)),        # feats, resident
                pl.BlockSpec((block_c, D), lambda j, i: (j, 0)),  # weight (f32)
                pl.BlockSpec((B, 1), lambda j, i: (0, 0)),        # labels, resident
            ],
            out_specs=pl.BlockSpec((block_b, block_c), lambda j, i: (i, j)),
            scratch_shapes=[
                pltpu.VMEM((block_c, D), jnp.bfloat16),   # bf16 weight tile
                pltpu.VMEM((1, block_c), jnp.float32),    # scale / ||w_c||
            ],
        ),
        compiler_params=pltpu.CompilerParams(
            # Batch axis must be "arbitrary" so megacore cannot split the inner
            # loop and skip the i == 0 initialization of the scratch buffers.
            dimension_semantics=("parallel", "arbitrary"),
            vmem_limit_bytes=48 * 1024 * 1024,
        ),
    )(feats_bf, weight, labels2d)


def init_arcface_weight(feat_dim, num_class, world_size):
    """Mimics the sharded init in __init__: per-shard N(0, 0.01), then concat.
    (Deterministic JAX RNG; not bitwise-identical to torch's generator.)"""
    shards = []
    per_shard = num_class // world_size
    for i in range(world_size):
        key = jax.random.PRNGKey(1234 + i)
        shards.append(0.01 * jax.random.normal(key, (per_shard, feat_dim),
                                               dtype=jnp.float32))
    # TODO(synk): torch.save of the initial weight has no in-kernel equivalent; skipped.
    return jnp.concatenate(shards, axis=0)


def arcface_reference(feats, weight, labels, *,
                      margin_arc=0.5, margin_am=0.0, scale=64.0,
                      matmul_dtype=jnp.float32):
    """Pure-JAX reference.  matmul_dtype=bfloat16 mirrors the kernel's
    mixed-precision matmul (f32 accumulation) for a tight comparison."""
    norm = jnp.sqrt(jnp.sum(weight * weight, axis=1, keepdims=True))   # (C, 1)
    inv_norm = 1.0 / jnp.maximum(norm, 1e-12)
    raw = jnp.dot(feats.astype(matmul_dtype), weight.astype(matmul_dtype).T,
                  preferred_element_type=jnp.float32)
    cos_theta = jnp.clip(raw * inv_norm.T, -1.0, 1.0)
    sin_theta = jnp.sqrt(1.0 - cos_theta ** 2)
    cos_theta_m = cos_theta * math.cos(margin_arc) - sin_theta * math.sin(margin_arc)
    cos_theta_m = jnp.where(cos_theta > math.cos(math.pi - margin_arc),
                            cos_theta_m, cos_theta - margin_am)
    onehot = jax.nn.one_hot(labels, cos_theta.shape[1], dtype=jnp.bool_)
    return jnp.where(onehot, cos_theta_m, cos_theta) * scale


if __name__ == "__main__":
    B = 64            # batch
    feat_dim = 128    # feature dimension (multiple of 128)
    num_class = 512   # total classes
    world_size = 2

    key = jax.random.PRNGKey(0)
    kf, kl = jax.random.split(key)
    feats = jax.random.normal(kf, (B, feat_dim), dtype=jnp.float32)
    labels = jax.random.randint(kl, (B,), 0, num_class, dtype=jnp.int32)
    weight = init_arcface_weight(feat_dim, num_class, world_size)

    ref_f32 = arcface_reference(feats, weight, labels)
    ref_bf16 = arcface_reference(feats, weight, labels, matmul_dtype=jnp.bfloat16)

    def check(out):
        assert out.shape == (B, num_class)
        # Tight check against the bf16-matmul (f32-accumulate) reference.
        assert jnp.allclose(out, ref_bf16, atol=2e-2, rtol=1e-3), \
            "mismatch vs bf16-matmul reference"
        # Loose statistical check against the full-f32 torch-semantics
        # reference (robust to rare bf16-induced margin-branch flips).
        frac_ok = jnp.mean((jnp.abs(out - ref_f32) <= 1.0).astype(jnp.float32))
        assert float(frac_ok) >= 0.999, "too many mismatches vs f32 reference"

    # Small tiles so the demo exercises a real 2x2 grid (class AND batch tiled,
    # including the pl.when(i==0) weight-cast caching across batch iterations).
    out_tiled = jax.block_until_ready(
        arcface_forward(feats, weight, labels, block_b=32, block_c=256))
    check(out_tiled)

    # Default tiles (degenerate 1x1 grid at these small demo shapes).
    out_default = jax.block_until_ready(arcface_forward(feats, weight, labels))
    check(out_default)

    print("KERNEL_OK")
</pallas_src>

<mosaic_0001>
module attributes {stable_mosaic.version = 11 : i64} {
  func.func @_arcface_kernel(%arg0: i32, %arg1: i32, %arg2: memref<64x128xbf16, #tpu.memory_space<vmem>>, %arg3: memref<256x128xf32, #tpu.memory_space<vmem>>, %arg4: memref<64x1xi32, #tpu.memory_space<vmem>>, %arg5: memref<32x256xf32, #tpu.memory_space<vmem>>, %arg6: memref<256x128xbf16, #tpu.memory_space<vmem>>, %arg7: memref<1x256xf32, #tpu.memory_space<vmem>>) attributes {dimension_semantics = [#tpu.dimension_semantics<parallel>, #tpu.dimension_semantics<arbitrary>], iteration_bounds = array<i64: 2, 2>, scalar_prefetch = 0 : i64, scratch_operands = 2 : i64, tpu.core_type = #tpu.core_type<tc>, window_params = [{pipeline_mode = #tpu.pipeline_mode<synchronous>, transform_indices = @transform_0, window_bounds = array<i64: 64, 128>}, {transform_indices = @transform_1, window_bounds = array<i64: 256, 128>}, {pipeline_mode = #tpu.pipeline_mode<synchronous>, transform_indices = @transform_2, window_bounds = array<i64: 64, 1>}, {transform_indices = @transform_3, window_bounds = array<i64: 32, 256>}]} {
    %c0_i32 = arith.constant 0 : i32
    %0 = arith.cmpi eq, %arg1, %c0_i32 : i32
    %1 = arith.extui %0 : i1 to i32
    %c0_i32_0 = arith.constant 0 : i32
    %2 = arith.cmpi ne, %1, %c0_i32_0 : i32
    scf.if %2 {
      %c0_20 = arith.constant 0 : index
      %c0_21 = arith.constant 0 : index
      %52 = vector.load %arg3[%c0_20, %c0_21] : memref<256x128xf32, #tpu.memory_space<vmem>>, vector<256x128xf32>
      %53 = arith.truncf %52 : vector<256x128xf32> to vector<256x128xbf16>
      %c0_22 = arith.constant 0 : index
      %c0_23 = arith.constant 0 : index
      %54 = vector.load %arg6[%c0_22, %c0_23] : memref<256x128xbf16, #tpu.memory_space<vmem>>, vector<256x128xbf16>
      tpu.vector_store %arg6[%c0_22, %c0_23], %53 {strides = array<i32>} : memref<256x128xbf16, #tpu.memory_space<vmem>>, vector<256x128xbf16>,
      %cst_24 = arith.constant 1.000000e+00 : f32
      %55 = vector.broadcast %cst_24 : f32 to vector<1x128xf32>
      %56 = arith.mulf %52, %52 : vector<256x128xf32>
      %cst_25 = arith.constant dense<0.000000e+00> : vector<1x256xf32>
      %57 = tpu.matmul %55, %56, %cst_25 {dimension_numbers = #tpu.dot_dimension_numbers<[1], [1], [0], [0], [0, 0, 1, 0], [], []>} : vector<1x128xf32>, vector<256x128xf32>, vector<1x256xf32> -> vector<1x256xf32>
      %58 = math.sqrt %57 : vector<1x256xf32>
      %cst_26 = arith.constant 9.99999996E-13 : f32
      %59 = vector.broadcast %cst_26 : f32 to vector<1x256xf32>
      %60 = arith.maximumf %58, %59 : vector<1x256xf32>
      %cst_27 = arith.constant 6.400000e+01 : f32
      %61 = vector.broadcast %cst_27 : f32 to vector<1x256xf32>
      %62 = arith.divf %61, %60 : vector<1x256xf32>
      %c0_28 = arith.constant 0 : index
      %c0_29 = arith.constant 0 : index
      %63 = vector.load %arg7[%c0_28, %c0_29] : memref<1x256xf32, #tpu.memory_space<vmem>>, vector<1x256xf32>
      tpu.vector_store %arg7[%c0_28, %c0_29], %62 {strides = array<i32>} : memref<1x256xf32, #tpu.memory_space<vmem>>, vector<1x256xf32>,
    } else {
    }
    %c32_i32 = arith.constant 32 : i32
    %3 = arith.muli %arg1, %c32_i32 : i32
    %4 = tpu.assume_multiple %3, 32 : i32
    %5 = arith.index_cast %4 : i32 to index
    %c0 = arith.constant 0 : index
    %6 = vector.load %arg2[%5, %c0] : memref<64x128xbf16, #tpu.memory_space<vmem>>, vector<32x128xbf16>
    %7 = arith.index_cast %4 : i32 to index
    %c0_1 = arith.constant 0 : index
    %8 = vector.load %arg4[%7, %c0_1] : memref<64x1xi32, #tpu.memory_space<vmem>>, vector<32x1xi32>
    %c0_2 = arith.constant 0 : index
    %c0_3 = arith.constant 0 : index
    %9 = vector.load %arg6[%c0_2, %c0_3] : memref<256x128xbf16, #tpu.memory_space<vmem>>, vector<256x128xbf16>
    %cst = arith.constant dense<0.000000e+00> : vector<32x256xf32>
    %10 = tpu.matmul %6, %9, %cst {dimension_numbers = #tpu.dot_dimension_numbers<[1], [1], [0], [0], [0, 0, 1, 0], [], []>} : vector<32x128xbf16>, vector<256x128xbf16>, vector<32x256xf32> -> vector<32x256xf32>
    %c0_4 = arith.constant 0 : index
    %c0_5 = arith.constant 0 : index
    %11 = vector.load %arg7[%c0_4, %c0_5] : memref<1x256xf32, #tpu.memory_space<vmem>>, vector<1x256xf32>
    %12 = vector.broadcast %11 : vector<1x256xf32> to vector<32x256xf32>
    %13 = arith.mulf %10, %12 : vector<32x256xf32>
    %cst_6 = arith.constant -6.400000e+01 : f32
    %cst_7 = arith.constant 6.400000e+01 : f32
    %14 = vector.broadcast %cst_6 : f32 to vector<32x256xf32>
    %15 = arith.maximumf %14, %13 : vector<32x256xf32>
    %16 = vector.broadcast %cst_7 : f32 to vector<32x256xf32>
    %17 = arith.minimumf %16, %15 : vector<32x256xf32>
    %c256_i32 = arith.constant 256 : i32
    %18 = arith.muli %arg0, %c256_i32 : i32
    %19 = vector.broadcast %18 : i32 to vector<32x1xi32>
    %20 = arith.subi %8, %19 : vector<32x1xi32>
    %21 = tpu.iota {dimensions = array<i32: 1>} : vector<32x256xi32>
    %22 = vector.broadcast %20 : vector<32x1xi32> to vector<32x256xi32>
    %23 = arith.cmpi eq, %21, %22 : vector<32x256xi32>
    %cst_8 = arith.constant 0.000000e+00 : f32
    %24 = vector.broadcast %cst_8 : f32 to vector<32x256xf32>
    %25 = arith.select %23, %17, %24 : vector<32x256xi1>, vector<32x256xf32>
    %cst_9 = arith.constant dense<0.000000e+00> : vector<32xf32>
    %26 = vector.multi_reduction <add>, %25, %cst_9 [1] : vector<32x256xf32> to vector<32xf32>
    %27 = vector.shape_cast %26 : vector<32xf32> to vector<32x1xf32>
    %cst_10 = arith.constant 1.562500e-02 : f32
    %28 = vector.broadcast %cst_10 : f32 to vector<32x1xf32>
    %29 = arith.mulf %27, %28 : vector<32x1xf32>
    %30 = arith.mulf %29, %29 : vector<32x1xf32>
    %cst_11 = arith.constant 1.000000e+00 : f32
    %31 = vector.broadcast %cst_11 : f32 to vector<32x1xf32>
    %32 = arith.subf %31, %30 : vector<32x1xf32>
    %cst_12 = arith.constant 0.000000e+00 : f32
    %33 = vector.broadcast %cst_12 : f32 to vector<32x1xf32>
    %34 = arith.maximumf %32, %33 : vector<32x1xf32>
    %35 = math.sqrt %34 : vector<32x1xf32>
    %cst_13 = arith.constant 0.87758255 : f32
    %36 = vector.broadcast %cst_13 : f32 to vector<32x1xf32>
    %37 = arith.mulf %29, %36 : vector<32x1xf32>
    %cst_14 = arith.constant 0.47942555 : f32
    %38 = vector.broadcast %cst_14 : f32 to vector<32x1xf32>
    %39 = arith.mulf %35, %38 : vector<32x1xf32>
    %40 = arith.subf %37, %39 : vector<32x1xf32>
    %cst_15 = arith.constant -0.87758255 : f32
    %41 = vector.broadcast %cst_15 : f32 to vector<32x1xf32>
    %42 = arith.cmpf ogt, %29, %41 : vector<32x1xf32>
    %cst_16 = arith.constant 0.000000e+00 : f32
    %43 = vector.broadcast %cst_16 : f32 to vector<32x1xf32>
    %44 = arith.subf %29, %43 : vector<32x1xf32>
    %45 = arith.select %42, %40, %44 : vector<32x1xi1>, vector<32x1xf32>
    %cst_17 = arith.constant 6.400000e+01 : f32
    %46 = vector.broadcast %cst_17 : f32 to vector<32x1xf32>
    %47 = arith.mulf %45, %46 : vector<32x1xf32>
    %48 = vector.shape_cast %47 : vector<32x1xf32> to vector<32x1xf32>
    %49 = vector.broadcast %48 : vector<32x1xf32> to vector<32x256xf32>
    %50 = arith.select %23, %49, %17 : vector<32x256xi1>, vector<32x256xf32>
    %c0_18 = arith.constant 0 : index
    %c0_19 = arith.constant 0 : index
    %51 = vector.load %arg5[%c0_18, %c0_19] : memref<32x256xf32, #tpu.memory_space<vmem>>, vector<32x256xf32>
    tpu.vector_store %arg5[%c0_18, %c0_19], %50 {strides = array<i32>} : memref<32x256xf32, #tpu.memory_space<vmem>>, vector<32x256xf32>,
    return
  }
  func.func @transform_0(%arg0: i32, %arg1: i32) -> (i32, i32) {
    %c0_i32 = arith.constant 0 : i32
    %c0_i32_0 = arith.constant 0 : i32
    %c0_i32_1 = arith.constant 0 : i32
    return %c0_i32, %c0_i32_0 : i32, i32
  }
  func.func @transform_1(%arg0: i32, %arg1: i32) -> (i32, i32) {
    %c0_i32 = arith.constant 0 : i32
    %c0_i32_0 = arith.constant 0 : i32
    return %arg0, %c0_i32 : i32, i32
  }
  func.func @transform_2(%arg0: i32, %arg1: i32) -> (i32, i32) {
    %c0_i32 = arith.constant 0 : i32
    %c0_i32_0 = arith.constant 0 : i32
    %c0_i32_1 = arith.constant 0 : i32
    return %c0_i32, %c0_i32_0 : i32, i32
  }
  func.func @transform_3(%arg0: i32, %arg1: i32) -> (i32, i32) {
    %c0_i32 = arith.constant 0 : i32
    return %arg1, %arg0 : i32, i32
  }
}

</mosaic_0001>

<llo_original>
// kernel: tpu_custom_call.1
$region0: #{tpu_custom_call.1}
  #allocation0 [shape = 'u32[]', space=smem, size = 0x4, offset = 0x4, fixed_abs, tag = 'smem constant byte address 0x4 - core index']
  #allocation1 [shape = 'u32[72,128]{1,0:T(1,128)}', space=vmem, size = 0x9000, scoped, tag = 'internal scratch']
  #allocation2 [shape = 'bf16[256,128]{1,0:T(8,128)(2,1)}', space=vmem, size = 0x10000, scoped, tag = 'scratch operand']
  #allocation3 [shape = 'f32[1,256]{1,0:T(1,128)}', space=vmem, size = 0x400, scoped, tag = 'scratch operand']
  %s0 = inlined_call_operand.vmem [shape: bf16[64,128], index: 0, kind: input, shape index: {}]
  %s1 = inlined_call_operand.hbm [shape: f32[512,128], index: 1, kind: input, shape index: {}]
  %s2 = inlined_call_operand.vmem [shape: s32[64,1], index: 2, kind: input, shape index: {}]
  %s3 = inlined_call_operand.hbm [shape: f32[64,512], index: 3, kind: output, shape index: {}]
  %s4 = sld [smem:[#allocation0]]
  $region53: #{tpu_custom_call.1} parent=0
    _
  %s6 = ssub.s32 1, %s4
  %s7 = scalar_select 0, %s6, %s4
  $region1: #{tpu_custom_call.1} parent=0
    #allocation4 [shape = 'u8[262144]{0}', space=vmem, size = 0x40000, scoped, tag = 'input window, operand 1']
    #allocation5 [shape = 's32[2]{0}', space=sflag, size = 0x8, scoped, tag = 'scoped memory for tpu_custom_call.1']
    #allocation6 [shape = 's32[2]{0}', space=sflag, size = 0x8, scoped, tag = 'scoped memory for tpu_custom_call.1']
    #allocation7 [shape = 'u8[65536]{0}', space=vmem, size = 0x10000, scoped, tag = 'output window, operand 0']
    %8 = vsyncpa [#allocation5], 0
    %s9 = scalar_lea.sflag [#allocation5], 1
    %10 = vsyncpa %s9, 0
    %11 = vsyncpa [#allocation6], 0
    %s12 = scalar_lea.sflag [#allocation6], 1
    %13 = vsyncpa %s12, 0
    loop: start=0, step=1, limit=6
    $region2: #{tpu_custom_call.1} parent=1 // loop_pre_header
      _
    $region3: #{tpu_custom_call.1} parent=1 // loop_header
      %s15 = sphi 0, %s19
      %p16 = scmp.ge.s32.totalorder %s15, 6
      %s22 = sphi 0, %s34
      %s23 = sphi 0, %s30
      %s24 = sphi 0, %s22
      %s25 = sphi 0, %s23
      %s26 = sphi 0, %s24
      %s27 = sphi 0, %s25
      %s35 = sphi 0, %s35
      %s37 = sphi 0, %s35
      %s38 = sphi 0, %s37
      %s52 = sphi 0, %s38
      %s58 = sphi 0, %s60
      %s61 = sphi 0, %s58
      %s62 = sphi 0, %s61
      %s78 = sphi 0, %s62
      %s82 = sphi 0, %s82
      %s84 = sphi 0, %s82
      %s85 = sphi 0, %s84
      %s99 = sphi 0, %s85
      %s107 = sphi 0, %s109
      %s110 = sphi 0, %s107
      %s111 = sphi 0, %s110
      %s127 = sphi 0, %s111
    $region4: #{tpu_custom_call.1} parent=1 // loop_header_branch
      %18 = sbr.rel (%p16) target = $region8
    $region5: #{tpu_custom_call.1} parent=1 // loop_body
      %s20 = ssub.s32 %s15, 1
      %s21 = ssub.s32 %s15, 2
      %s28 = sadd.s32 1, %s23
      %p29 = scmp.ge.s32.totalorder %s28, 2
      %s30 = scalar_select %p29, 0, %s28
      %s31 = sadd.s32 1, %s22
      %s32 = scalar_select %p29, %s31, %s22
      %p33 = scmp.ge.s32.totalorder %s32, 2
      %s34 = scalar_select %p33, 0, %s32
      %s36 = sadd.s32 %s35, 1
      %p39 = scmp.eq.s32.totalorder %s15, 3
      %p40 = scmp.ne.s32.totalorder %s35, %s37
      %p41 = scmp.eq.s32.totalorder %s15, 0
      %p42 = por %p40, %p41
      %p43 = scmp.ne.s32.totalorder %s35, %s37
      %p44 = scmp.eq.s32.totalorder %s20, 3
      %p45 = por %p43, %p44
      %p46 = scmp.ne.s32.totalorder %s37, %s38
      %p47 = scmp.eq.s32.totalorder %s20, 0
      %p48 = por %p46, %p47
      %p49 = scmp.ne.s32.totalorder %s37, %s38
      %p50 = scmp.eq.s32.totalorder %s21, 3
      %p51 = por %p49, %p50
      %p53 = scmp.ne.s32.totalorder %s38, %s52
      %p54 = scmp.eq.s32.totalorder %s21, 0
      %p55 = por %p53, %p54
      %s56 = ssub.s32 %s22, %s34
      %p57 = scmp.eq.s32.totalorder %s56, 0
      %s59 = sadd.s32 %s58, 1
      %s60 = scalar_select %p57, %s58, %s59
      %p63 = pneg %p57
      %p64 = scmp.eq.s32.totalorder %s15, 3
      %p65 = por %p63, %p64
      %p66 = scmp.ne.s32.totalorder %s58, %s61
      %p67 = scmp.eq.s32.totalorder %s15, 0
      %p68 = por %p66, %p67
      %p69 = scmp.ne.s32.totalorder %s58, %s61
      %p70 = scmp.eq.s32.totalorder %s20, 3
      %p71 = por %p69, %p70
      %p72 = scmp.ne.s32.totalorder %s61, %s62
      %p73 = scmp.eq.s32.totalorder %s20, 0
      %p74 = por %p72, %p73
      %p75 = scmp.ne.s32.totalorder %s61, %s62
      %p76 = scmp.eq.s32.totalorder %s21, 3
      %p77 = por %p75, %p76
      %p79 = scmp.ne.s32.totalorder %s62, %s78
      %p80 = scmp.eq.s32.totalorder %s21, 0
      %p81 = por %p79, %p80
      %s83 = sadd.s32 %s82, 1
      %p86 = scmp.eq.s32.totalorder %s15, 3
      %p87 = scmp.ne.s32.totalorder %s82, %s84
      %p88 = scmp.eq.s32.totalorder %s15, 0
      %p89 = por %p87, %p88
      %p90 = scmp.ne.s32.totalorder %s82, %s84
      %p91 = scmp.eq.s32.totalorder %s20, 3
      %p92 = por %p90, %p91
      %p93 = scmp.ne.s32.totalorder %s84, %s85
      %p94 = scmp.eq.s32.totalorder %s20, 0
      %p95 = por %p93, %p94
      %p96 = scmp.ne.s32.totalorder %s84, %s85
      %p97 = scmp.eq.s32.totalorder %s21, 3
      %p98 = por %p96, %p97
      %p100 = scmp.ne.s32.totalorder %s85, %s99
      %p101 = scmp.eq.s32.totalorder %s21, 0
      %p102 = por %p100, %p101
      %s103 = ssub.s32 %s23, %s30
      %s104 = ssub.s32 %s22, %s34
      %s105 = sor.u32 %s103, %s104
      %p106 = scmp.eq.s32.totalorder %s105, 0
      %s108 = sadd.s32 %s107, 1
      %s109 = scalar_select %p106, %s107, %s108
      %p112 = pneg %p106
      %p113 = scmp.eq.s32.totalorder %s15, 3
      %p114 = por %p112, %p113
      %p115 = scmp.ne.s32.totalorder %s107, %s110
      %p116 = scmp.eq.s32.totalorder %s15, 0
      %p117 = por %p115, %p116
      %p118 = scmp.ne.s32.totalorder %s107, %s110
      %p119 = scmp.eq.s32.totalorder %s20, 3
      %p120 = por %p118, %p119
      %p121 = scmp.ne.s32.totalorder %s110, %s111
      %p122 = scmp.eq.s32.totalorder %s20, 0
      %p123 = por %p121, %p122
      %p124 = scmp.ne.s32.totalorder %s110, %s111
      %p125 = scmp.eq.s32.totalorder %s21, 3
      %p126 = por %p124, %p125
      %p128 = scmp.ne.s32.totalorder %s111, %s127
      %p129 = scmp.eq.s32.totalorder %s21, 0
      %p130 = por %p128, %p129
      %p131 = scmp.le.s32.totalorder 1, %s15
      %p132 = scmp.lt.s32.totalorder %s15, 5
      %p133 = pnand %p131, %p132
      %p134 = pneg %p133
      // Predicated region
      $region9: #{tpu_custom_call.1} parent=5 // pred_check
        _
      $region10: #{tpu_custom_call.1} parent=5 // pred_check_branch
        %136 = sbr.rel (%p133) target = $region12
      $region11: #{tpu_custom_call.1} parent=5 // pred_region
        %s137 = ssub.s32 %s15, 1
        // Predicated region
        $region13: #{tpu_custom_call.1} parent=11 // pred_check
          %p138 = pneg %p48
        $region14: #{tpu_custom_call.1} parent=11 // pred_check_branch
          %140 = sbr.rel (%p138) target = $region16
        $region15: #{tpu_custom_call.1} parent=11 // pred_region
          _
        $region16: #{tpu_custom_call.1} parent=11 // pred_fallthru
          _
        // Predicated region
        $region17: #{tpu_custom_call.1} parent=11 // pred_check
          %p141 = pneg %p95
        $region18: #{tpu_custom_call.1} parent=11 // pred_check_branch
          %143 = sbr.rel (%p141) target = $region20
        $region19: #{tpu_custom_call.1} parent=11 // pred_region
          _
        $region20: #{tpu_custom_call.1} parent=11 // pred_fallthru
          _
      $region12: #{tpu_custom_call.1} parent=5 // pred_fallthru
        _
      %p144 = scmp.lt.s32.totalorder %s15, 4
      // Predicated region
      $region21: #{tpu_custom_call.1} parent=5 // pred_check
        %p145 = pneg %p144
      $region22: #{tpu_custom_call.1} parent=5 // pred_check_branch
        %147 = sbr.rel (%p145) target = $region24
      $region23: #{tpu_custom_call.1} parent=5 // pred_region
        // Predicated region
        $region25: #{tpu_custom_call.1} parent=23 // pred_check
          %p148 = pneg %p68
        $region26: #{tpu_custom_call.1} parent=23 // pred_check_branch
          %150 = sbr.rel (%p148) target = $region28
        $region27: #{tpu_custom_call.1} parent=23 // pred_region
          %s151 = sand.u32 %s58, 1
          %s152 = scalar_lea.sflag [#allocation5], %s151
          %s153 = sand.u32 %s58, 1
          %s154 = smul.addr %s153, 256
          %s155 = scalar_lea.vmem [#allocation4], %s154
          %s156 = smul.u32 32, %s22
          %158 = vsyncadd %s152, 0
          %s159 = smul.addr %s156, 8
          %s160 = scalar_lea.hbm %s1, %s159
          %s161 = sshll.u32 %s160, 4
          %s162 = int_to_ptr.hbm [resolvable:$true] %s161
          %s163 = sshll.u32 %s155, 4
          %s164 = int_to_ptr.vmem [resolvable:$true] %s163
          %169 = dma.hbm_to_vmem [thread:$0]  %s162, 4096, %s164, %s152, 128, 128, 8
        $region28: #{tpu_custom_call.1} parent=23 // pred_fallthru
          _
      $region24: #{tpu_custom_call.1} parent=5 // pred_fallthru
        _
      %p170 = scmp.le.s32.totalorder 1, %s15
      %p171 = scmp.lt.s32.totalorder %s15, 5
      %p172 = pnand %p170, %p171
      %p173 = pneg %p172
      // Predicated region
      $region29: #{tpu_custom_call.1} parent=5 // pred_check
        _
      $region30: #{tpu_custom_call.1} parent=5 // pred_check_branch
        %175 = sbr.rel (%p172) target = $region32
      $region31: #{tpu_custom_call.1} parent=5 // pred_region
        %s176 = ssub.s32 %s15, 1
        %s177 = sand.u32 %s61, 1
        %s178 = scalar_lea.sflag [#allocation5], %s177
        %s179 = sand.u32 %s61, 1
        %s180 = smul.addr %s179, 256
        %s181 = scalar_lea.vmem [#allocation4], %s180
        // Predicated region
        $region33: #{tpu_custom_call.1} parent=31 // pred_check
          %p182 = pneg %p74
        $region34: #{tpu_custom_call.1} parent=31 // pred_check_branch
          %184 = sbr.rel (%p182) target = $region36
        $region35: #{tpu_custom_call.1} parent=31 // pred_region
          %186 = dma.done %s178, 4096
        $region36: #{tpu_custom_call.1} parent=31 // pred_fallthru
          _
        %p187 = pneg %p48
        %p188 = pneg %p45
        %s189 = sand.u32 %s61, 1
        %s190 = scalar_lea.sflag [#allocation5], %s189
        %s191 = sand.u32 %s61, 1
        %s192 = smul.addr %s191, 256
        %s193 = scalar_lea.vmem [#allocation4], %s192
        %p194 = pneg %p74
        %p195 = pneg %p71
        %p196 = pneg %p95
        %p197 = pneg %p92
        %p198 = pneg %p123
        %p199 = pneg %p120
        %s200 = sand.u32 %s110, 1
        %s201 = scalar_lea.sflag [#allocation6], %s200
        %s202 = sand.u32 %s110, 1
        %s203 = smul.addr %s202, 64
        %s204 = scalar_lea.vmem [#allocation7], %s203
        %s205 = smul.u32 32, %s24
        %s206 = smul.u32 4, %s25
        %s207 = smul.u32 2, %s24
        %p208 = scmp.eq.s32.totalorder %s25, 0
        // Predicated region
        $region37: #{tpu_custom_call.1} parent=31 // pred_check
          %p209 = pneg %p208
        $region38: #{tpu_custom_call.1} parent=31 // pred_check_branch
          %211 = sbr.rel (%p209) target = $region40
        $region39: #{tpu_custom_call.1} parent=31 // pred_region
          %v212 = vld [vmem:[%s181] sm:$0xff]
          %v213 = vld [vmem:[%s181 + $0x8] sm:$0xff]
          %v214 = vld [vmem:[%s181 + $0x10] sm:$0xff]
          %v215 = vld [vmem:[%s181 + $0x18] sm:$0xff]
          %v216 = vld [vmem:[%s181 + $0x20] sm:$0xff]
          %v217 = vld [vmem:[%s181 + $0x28] sm:$0xff]
          %v218 = vld [vmem:[%s181 + $0x30] sm:$0xff]
          %v219 = vld [vmem:[%s181 + $0x38] sm:$0xff]
          %v220 = vld [vmem:[%s181 + $0x40] sm:$0xff]
          %v221 = vld [vmem:[%s181 + $0x48] sm:$0xff]
          %v222 = vld [vmem:[%s181 + $0x50] sm:$0xff]
          %v223 = vld [vmem:[%s181 + $0x58] sm:$0xff]
          %v224 = vld [vmem:[%s181 + $0x60] sm:$0xff]
          %v225 = vld [vmem:[%s181 + $0x68] sm:$0xff]
          %v226 = vld [vmem:[%s181 + $0x70] sm:$0xff]
          %v227 = vld [vmem:[%s181 + $0x78] sm:$0xff]
          %v228 = vld [vmem:[%s181 + $0x80] sm:$0xff]
          %v229 = vld [vmem:[%s181 + $0x88] sm:$0xff]
          %v230 = vld [vmem:[%s181 + $0x90] sm:$0xff]
          %v231 = vld [vmem:[%s181 + $0x98] sm:$0xff]
          %v232 = vld [vmem:[%s181 + $0xa0] sm:$0xff]
          %v233 = vld [vmem:[%s181 + $0xa8] sm:$0xff]
          %v234 = vld [vmem:[%s181 + $0xb0] sm:$0xff]
          %v235 = vld [vmem:[%s181 + $0xb8] sm:$0xff]
          %v236 = vld [vmem:[%s181 + $0xc0] sm:$0xff]
          %v237 = vld [vmem:[%s181 + $0xc8] sm:$0xff]
          %v238 = vld [vmem:[%s181 + $0xd0] sm:$0xff]
          %v239 = vld [vmem:[%s181 + $0xd8] sm:$0xff]
          %v240 = vld [vmem:[%s181 + $0xe0] sm:$0xff]
          %v241 = vld [vmem:[%s181 + $0xe8] sm:$0xff]
          %v242 = vld [vmem:[%s181 + $0xf0] sm:$0xff]
          %v243 = vld [vmem:[%s181 + $0xf8] sm:$0xff]
          %v244 = vpack.c.bf16 %v212, %v212
          %v245 = vpack.c.bf16 %v213, %v213
          %v246 = vpack.c.bf16 %v214, %v214
          %v247 = vpack.c.bf16 %v215, %v215
          %v248 = vpack.c.bf16 %v216, %v216
          %v249 = vpack.c.bf16 %v217, %v217
          %v250 = vpack.c.bf16 %v218, %v218
          %v251 = vpack.c.bf16 %v219, %v219
          %v252 = vpack.c.bf16 %v220, %v220
          %v253 = vpack.c.bf16 %v221, %v221
          %v254 = vpack.c.bf16 %v222, %v222
          %v255 = vpack.c.bf16 %v223, %v223
          %v256 = vpack.c.bf16 %v224, %v224
          %v257 = vpack.c.bf16 %v225, %v225
          %v258 = vpack.c.bf16 %v226, %v226
          %v259 = vpack.c.bf16 %v227, %v227
          %v260 = vpack.c.bf16 %v228, %v228
          %v261 = vpack.c.bf16 %v229, %v229
          %v262 = vpack.c.bf16 %v230, %v230
          %v263 = vpack.c.bf16 %v231, %v231
          %v264 = vpack.c.bf16 %v232, %v232
          %v265 = vpack.c.bf16 %v233, %v233
          %v266 = vpack.c.bf16 %v234, %v234
          %v267 = vpack.c.bf16 %v235, %v235
          %v268 = vpack.c.bf16 %v236, %v236
          %v269 = vpack.c.bf16 %v237, %v237
          %v270 = vpack.c.bf16 %v238, %v238
          %v271 = vpack.c.bf16 %v239, %v239
          %v272 = vpack.c.bf16 %v240, %v240
          %v273 = vpack.c.bf16 %v241, %v241
          %v274 = vpack.c.bf16 %v242, %v242
          %v275 = vpack.c.bf16 %v243, %v243
          %276 = vst [vmem:[#allocation2] sm:$0xf] %v244
          %277 = vst [vmem:[#allocation2 + $0x4] sm:$0xf] %v245
          %278 = vst [vmem:[#allocation2 + $0x8] sm:$0xf] %v246
          %279 = vst [vmem:[#allocation2 + $0xc] sm:$0xf] %v247
          %280 = vst [vmem:[#allocation2 + $0x10] sm:$0xf] %v248
          %281 = vst [vmem:[#allocation2 + $0x14] sm:$0xf] %v249
          %282 = vst [vmem:[#allocation2 + $0x18] sm:$0xf] %v250
          %283 = vst [vmem:[#allocation2 + $0x1c] sm:$0xf] %v251
          %284 = vst [vmem:[#allocation2 + $0x20] sm:$0xf] %v252
          %285 = vst [vmem:[#allocation2 + $0x24] sm:$0xf] %v253
          %286 = vst [vmem:[#allocation2 + $0x28] sm:$0xf] %v254
          %287 = vst [vmem:[#allocation2 + $0x2c] sm:$0xf] %v255
          %288 = vst [vmem:[#allocation2 + $0x30] sm:$0xf] %v256
          %289 = vst [vmem:[#allocation2 + $0x34] sm:$0xf] %v257
          %290 = vst [vmem:[#allocation2 + $0x38] sm:$0xf] %v258
          %291 = vst [vmem:[#allocation2 + $0x3c] sm:$0xf] %v259
          %292 = vst [vmem:[#allocation2 + $0x40] sm:$0xf] %v260
          %293 = vst [vmem:[#allocation2 + $0x44] sm:$0xf] %v261
          %294 = vst [vmem:[#allocation2 + $0x48] sm:$0xf] %v262
          %295 = vst [vmem:[#allocation2 + $0x4c] sm:$0xf] %v263
          %296 = vst [vmem:[#allocation2 + $0x50] sm:$0xf] %v264
          %297 = vst [vmem:[#allocation2 + $0x54] sm:$0xf] %v265
          %298 = vst [vmem:[#allocation2 + $0x58] sm:$0xf] %v266
          %299 = vst [vmem:[#allocation2 + $0x5c] sm:$0xf] %v267
          %300 = vst [vmem:[#allocation2 + $0x60] sm:$0xf] %v268
          %301 = vst [vmem:[#allocation2 + $0x64] sm:$0xf] %v269
          %302 = vst [vmem:[#allocation2 + $0x68] sm:$0xf] %v270
          %303 = vst [vmem:[#allocation2 + $0x6c] sm:$0xf] %v271
          %304 = vst [vmem:[#allocation2 + $0x70] sm:$0xf] %v272
          %305 = vst [vmem:[#allocation2 + $0x74] sm:$0xf] %v273
          %306 = vst [vmem:[#allocation2 + $0x78] sm:$0xf] %v274
          %307 = vst [vmem:[#allocation2 + $0x7c] sm:$0xf] %v275
          %v308 = vmul.f32 %v212, %v212
          %v309 = vmul.f32 %v213, %v213
          %v310 = vmul.f32 %v214, %v214
          %v311 = vmul.f32 %v215, %v215
          %v312 = vmul.f32 %v216, %v216
          %v313 = vmul.f32 %v217, %v217
          %v314 = vmul.f32 %v218, %v218
          %v315 = vmul.f32 %v219, %v219
          %v316 = vmul.f32 %v220, %v220
          %v317 = vmul.f32 %v221, %v221
          %v318 = vmul.f32 %v222, %v222
          %v319 = vmul.f32 %v223, %v223
          %v320 = vmul.f32 %v224, %v224
          %v321 = vmul.f32 %v225, %v225
          %v322 = vmul.f32 %v226, %v226
          %v323 = vmul.f32 %v227, %v227
          %v324 = vmul.f32 %v228, %v228
          %v325 = vmul.f32 %v229, %v229
          %v326 = vmul.f32 %v230, %v230
          %v327 = vmul.f32 %v231, %v231
          %v328 = vmul.f32 %v232, %v232
          %v329 = vmul.f32 %v233, %v233
          %v330 = vmul.f32 %v234, %v234
          %v331 = vmul.f32 %v235, %v235
          %v332 = vmul.f32 %v236, %v236
          %v333 = vmul.f32 %v237, %v237
          %v334 = vmul.f32 %v238, %v238
          %v335 = vmul.f32 %v239, %v239
          %v336 = vmul.f32 %v240, %v240
          %v337 = vmul.f32 %v241, %v241
          %v338 = vmul.f32 %v242, %v242
          %v339 = vmul.f32 %v243, %v243
          %340 = vmatpush.xpose.msra.mxu0 %v323
          %341 = vmatpush.xpose.msra.mxu0 %v322
          %342 = vmatpush.xpose.msra.mxu0 %v321
          %343 = vmatpush.xpose.msra.mxu0 %v320
          %344 = vmatpush.xpose.msra.mxu0 %v319
          %345 = vmatpush.xpose.msra.mxu0 %v318
          %346 = vmatpush.xpose.msra.mxu0 %v317
          %347 = vmatpush.xpose.msra.mxu0 %v316
          %348 = vmatpush.xpose.msra.mxu0 %v315
          %349 = vmatpush.xpose.msra.mxu0 %v314
          %350 = vmatpush.xpose.msra.mxu0 %v313
          %351 = vmatpush.xpose.msra.mxu0 %v312
          %352 = vmatpush.xpose.msra.mxu0 %v311
          %353 = vmatpush.xpose.msra.mxu0 %v310
          %354 = vmatpush.xpose.msra.mxu0 %v309
          %355 = vmatpush.xpose.msra.mxu0 %v308
          %356 = vmatmul.f32.gmra.mxu0 1.0
          %v357 = vpop.f32.mrf.mxu0
          %v358 = vadd.f32 0.0, %v357
          %359 = vdwg.mxu0
          %360 = vmatpush.xpose.msra.mxu0 %v339
          %361 = vmatpush.xpose.msra.mxu0 %v338
          %362 = vmatpush.xpose.msra.mxu0 %v337
          %363 = vmatpush.xpose.msra.mxu0 %v336
          %364 = vmatpush.xpose.msra.mxu0 %v335
          %365 = vmatpush.xpose.msra.mxu0 %v334
          %366 = vmatpush.xpose.msra.mxu0 %v333
          %367 = vmatpush.xpose.msra.mxu0 %v332
          %368 = vmatpush.xpose.msra.mxu0 %v331
          %369 = vmatpush.xpose.msra.mxu0 %v330
          %370 = vmatpush.xpose.msra.mxu0 %v329
          %371 = vmatpush.xpose.msra.mxu0 %v328
          %372 = vmatpush.xpose.msra.mxu0 %v327
          %373 = vmatpush.xpose.msra.mxu0 %v326
          %374 = vmatpush.xpose.msra.mxu0 %v325
          %375 = vmatpush.xpose.msra.mxu0 %v324
          %376 = vmatmul.f32.gmra.mxu0 1.0
          %v377 = vpop.f32.mrf.mxu0
          %v378 = vadd.f32 0.0, %v377
          %379 = vdwg.mxu0
          %v380 = vrsqrt.pop %v358
          %v381 = vmul.f32 %v380, %v358
          %v382 = vmul.f32 %v381, %v380
          %v383 = vmul.f32 0.5, %v382
          %v384 = vsub.f32 1.5, %v383
          %v385 = vmul.f32 %v380, %v384
          %v386 = vmul.f32 %v358, %v385
          %vm387 = vcmp.eq.f32.partialorder %v358, inf
          %v388 = vsel %vm387, %v358, %v386
          %vm389 = vcmp.eq.f32.partialorder %v358, 0.0
          %v390 = vand.u32 %v358, 2147483648
          %v391 = vsel %vm389, %v390, %v388
          %v392 = vrsqrt.pop %v378
          %v393 = vmul.f32 %v392, %v378
          %v394 = vmul.f32 %v393, %v392
          %v395 = vmul.f32 0.5, %v394
          %v396 = vsub.f32 1.5, %v395
          %v397 = vmul.f32 %v392, %v396
          %v398 = vmul.f32 %v378, %v397
          %vm399 = vcmp.eq.f32.partialorder %v378, inf
          %v400 = vsel %vm399, %v378, %v398
          %vm401 = vcmp.eq.f32.partialorder %v378, 0.0
          %v402 = vand.u32 %v378, 2147483648
          %v403 = vsel %vm401, %v402, %v400
          %v404 = vmax.f32 %v391, 1e-12
          %v405 = vmax.f32 %v403, 1e-12
          %v406 = vrcp.pop %v404
          %v407 = vmul.f32 %v404, %v406
          %v408 = vsub.f32 1.0, %v407
          %v409 = vmul.f32 %v406, %v408
          %v410 = vadd.f32 %v406, %v409
          %vm411 = vweird.f32 %v404
          %vm412 = vweird.f32 %v406
          %vm413 = vmor %vm411, %vm412
          %v414 = vsel %vm413, %v406, %v410
          %v415 = vand.u32 2147483647, %v404
          %vm416 = vcmp.eq.f32.partialorder %v415, 8.507059e+37
          %v417 = vand.u32 %v404, 2147483648
          %v418 = vor.u32 1.1754944e-38, %v417
          %v419 = vsel %vm416, %v418, %v414
          %v420 = vmul.f32 64.0, %v419
          %v421 = vrcp.pop %v405
          %v422 = vmul.f32 %v405, %v421
          %v423 = vsub.f32 1.0, %v422
          %v424 = vmul.f32 %v421, %v423
          %v425 = vadd.f32 %v421, %v424
          %vm426 = vweird.f32 %v405
          %vm427 = vweird.f32 %v421
          %vm428 = vmor %vm426, %vm427
          %v429 = vsel %vm428, %v421, %v425
          %v430 = vand.u32 2147483647, %v405
          %vm431 = vcmp.eq.f32.partialorder %v430, 8.507059e+37
          %v432 = vand.u32 %v405, 2147483648
          %v433 = vor.u32 1.1754944e-38, %v432
          %v434 = vsel %vm431, %v433, %v429
          %v435 = vmul.f32 64.0, %v434
          %v438 = vrot.slane %v435, 7
          %vm439 = vcmask 1040384
          %v440 = vsel %vm439, %v420, %v438
          %v442 = vlaneseq
          %vm443 = vcmp.ge.s32.totalorder %v442, 0
          %vm444 = vcmp.lt.s32.totalorder %v442, 256
          %vm445 = vmand %vm443, %vm444
          %446 = vst.msk [vmem:[#allocation3] sm:$0x3] %vm445, %v440
        $region40: #{tpu_custom_call.1} parent=31 // pred_fallthru
          _
        %s447 = smul.u32 %s25, 32
        %s448 = sshra.s32 %s447, 3
        %s449 = sand.u32 %s447, 7
        %s450 = smul.addr %s448, 4
        %s451 = scalar_lea.vmem %s0, %s450
        %v452 = vld [vmem:[%s451] sm:$0xf]
        %v453 = vld [vmem:[%s451 + $0x4] sm:$0xf]
        %v454 = vld [vmem:[%s451 + $0x8] sm:$0xf]
        %v455 = vld [vmem:[%s451 + $0xc] sm:$0xf]
        %s456 = scalar_lea.vmem %s2, %s447
        %v457 = vld [vmem:[%s456] sm:$0xff]
        %v458 = vld [vmem:[%s456 + $0x8] sm:$0xff]
        %v459 = vld [vmem:[%s456 + $0x10] sm:$0xff]
        %v460 = vld [vmem:[%s456 + $0x18] sm:$0xff]
        %v461 = vld [vmem:[#allocation2] sm:$0xf]
        %v462 = vld [vmem:[#allocation2 + $0x4] sm:$0xf]
        %v463 = vld [vmem:[#allocation2 + $0x8] sm:$0xf]
        %v464 = vld [vmem:[#allocation2 + $0xc] sm:$0xf]
        %v465 = vld [vmem:[#allocation2 + $0x10] sm:$0xf]
        %v466 = vld [vmem:[#allocation2 + $0x14] sm:$0xf]
        %v467 = vld [vmem:[#allocation2 + $0x18] sm:$0xf]
        %v468 = vld [vmem:[#allocation2 + $0x1c] sm:$0xf]
        %v469 = vld [vmem:[#allocation2 + $0x20] sm:$0xf]
        %v470 = vld [vmem:[#allocation2 + $0x24] sm:$0xf]
        %v471 = vld [vmem:[#allocation2 + $0x28] sm:$0xf]
        %v472 = vld [vmem:[#allocation2 + $0x2c] sm:$0xf]
        %v473 = vld [vmem:[#allocation2 + $0x30] sm:$0xf]
        %v474 = vld [vmem:[#allocation2 + $0x34] sm:$0xf]
        %v475 = vld [vmem:[#allocation2 + $0x38] sm:$0xf]
        %v476 = vld [vmem:[#allocation2 + $0x3c] sm:$0xf]
        %v477 = vld [vmem:[#allocation2 + $0x40] sm:$0xf]
        %v478 = vld [vmem:[#allocation2 + $0x44] sm:$0xf]
        %v479 = vld [vmem:[#allocation2 + $0x48] sm:$0xf]
        %v480 = vld [vmem:[#allocation2 + $0x4c] sm:$0xf]
        %v481 = vld [vmem:[#allocation2 + $0x50] sm:$0xf]
        %v482 = vld [vmem:[#allocation2 + $0x54] sm:$0xf]
        %v483 = vld [vmem:[#allocation2 + $0x58] sm:$0xf]
        %v484 = vld [vmem:[#allocation2 + $0x5c] sm:$0xf]
        %v485 = vld [vmem:[#allocation2 + $0x60] sm:$0xf]
        %v486 = vld [vmem:[#allocation2 + $0x64] sm:$0xf]
        %v487 = vld [vmem:[#allocation2 + $0x68] sm:$0xf]
        %v488 = vld [vmem:[#allocation2 + $0x6c] sm:$0xf]
        %v489 = vld [vmem:[#allocation2 + $0x70] sm:$0xf]
        %v490 = vld [vmem:[#allocation2 + $0x74] sm:$0xf]
        %v491 = vld [vmem:[#allocation2 + $0x78] sm:$0xf]
        %v492 = vld [vmem:[#allocation2 + $0x7c] sm:$0xf]
        %v497 = vunpack.c.l.b16 %v452
        %v498 = vunpack.c.l.b16 %v453
        %v499 = vunpack.c.l.b16 %v454
        %v500 = vunpack.c.l.b16 %v455
        %v501 = vpack.c.b16 %v498, %v497
        %v502 = vpack.c.b16 %v500, %v499
        %v537 = vunpack.c.l.b16 %v461
        %v538 = vunpack.c.l.b16 %v462
        %v539 = vunpack.c.l.b16 %v463
        %v540 = vunpack.c.l.b16 %v464
        %v541 = vunpack.c.l.b16 %v465
        %v542 = vunpack.c.l.b16 %v466
        %v543 = vunpack.c.l.b16 %v467
        %v544 = vunpack.c.l.b16 %v468
        %v545 = vunpack.c.l.b16 %v469
        %v546 = vunpack.c.l.b16 %v470
        %v547 = vunpack.c.l.b16 %v471
        %v548 = vunpack.c.l.b16 %v472
        %v549 = vunpack.c.l.b16 %v473
        %v550 = vunpack.c.l.b16 %v474
        %v551 = vunpack.c.l.b16 %v475
        %v552 = vunpack.c.l.b16 %v476
        %v553 = vunpack.c.l.b16 %v477
        %v554 = vunpack.c.l.b16 %v478
        %v555 = vunpack.c.l.b16 %v479
        %v556 = vunpack.c.l.b16 %v480
        %v557 = vunpack.c.l.b16 %v481
        %v558 = vunpack.c.l.b16 %v482
        %v559 = vunpack.c.l.b16 %v483
        %v560 = vunpack.c.l.b16 %v484
        %v561 = vunpack.c.l.b16 %v485
        %v562 = vunpack.c.l.b16 %v486
        %v563 = vunpack.c.l.b16 %v487
        %v564 = vunpack.c.l.b16 %v488
        %v565 = vunpack.c.l.b16 %v489
        %v566 = vunpack.c.l.b16 %v490
        %v567 = vunpack.c.l.b16 %v491
        %v568 = vunpack.c.l.b16 %v492
        %v569 = vpack.c.b16 %v538, %v537
        %v570 = vpack.c.b16 %v540, %v539
        %v571 = vpack.c.b16 %v542, %v541
        %v572 = vpack.c.b16 %v544, %v543
        %v573 = vpack.c.b16 %v546, %v545
        %v574 = vpack.c.b16 %v548, %v547
        %v575 = vpack.c.b16 %v550, %v549
        %v576 = vpack.c.b16 %v552, %v551
        %v577 = vpack.c.b16 %v554, %v553
        %v578 = vpack.c.b16 %v556, %v555
        %v579 = vpack.c.b16 %v558, %v557
        %v580 = vpack.c.b16 %v560, %v559
        %v581 = vpack.c.b16 %v562, %v561
        %v582 = vpack.c.b16 %v564, %v563
        %v583 = vpack.c.b16 %v566, %v565
        %v584 = vpack.c.b16 %v568, %v567
        %601 = vmatpush.bf16.xpose.msra.mxu0 %v576
        %602 = vmatpush.bf16.xpose.msra.mxu0 %v575
        %603 = vmatpush.bf16.xpose.msra.mxu0 %v574
        %604 = vmatpush.bf16.xpose.msra.mxu0 %v573
        %605 = vmatpush.bf16.xpose.msra.mxu0 %v572
        %606 = vmatpush.bf16.xpose.msra.mxu0 %v571
        %607 = vmatpush.bf16.xpose.msra.mxu0 %v570
        %608 = vmatpush.bf16.xpose.msra.mxu0 %v569
        %609 = vmatmul.bf16.gmra.mxu0 %v501
        %v610 = vpop.f32.mrf.mxu0
        %v611 = vadd.f32 0.0, %v610
        %v612 = vpop.f32.mrf.mxu0
        %v613 = vadd.f32 0.0, %v612
        %614 = vmatmul.bf16.gmra.mxu0 %v502
        %v615 = vpop.f32.mrf.mxu0
        %v616 = vadd.f32 0.0, %v615
        %v617 = vpop.f32.mrf.mxu0
        %v618 = vadd.f32 0.0, %v617
        %619 = vdwg.mxu0
        %620 = vmatpush.bf16.xpose.msra.mxu0 %v584
        %621 = vmatpush.bf16.xpose.msra.mxu0 %v583
        %622 = vmatpush.bf16.xpose.msra.mxu0 %v582
        %623 = vmatpush.bf16.xpose.msra.mxu0 %v581
        %624 = vmatpush.bf16.xpose.msra.mxu0 %v580
        %625 = vmatpush.bf16.xpose.msra.mxu0 %v579
        %626 = vmatpush.bf16.xpose.msra.mxu0 %v578
        %627 = vmatpush.bf16.xpose.msra.mxu0 %v577
        %628 = vmatmul.bf16.gmra.mxu0 %v501
        %v629 = vpop.f32.mrf.mxu0
        %v630 = vadd.f32 0.0, %v629
        %v631 = vpop.f32.mrf.mxu0
        %v632 = vadd.f32 0.0, %v631
        %633 = vmatmul.bf16.gmra.mxu0 %v502
        %v634 = vpop.f32.mrf.mxu0
        %v635 = vadd.f32 0.0, %v634
        %v636 = vpop.f32.mrf.mxu0
        %v637 = vadd.f32 0.0, %v636
        %638 = vdwg.mxu0
        %v639 = vld [vmem:[#allocation3] sm:$0x3]
        %v641 = vperm.slane %v639, 0
        %v642 = vperm.slane %v639, 1
        %v645 = vmul.f32 %v611, %v641
        %v646 = vmul.f32 %v630, %v642
        %v647 = vmul.f32 %v613, %v641
        %v648 = vmul.f32 %v632, %v642
        %v649 = vmul.f32 %v616, %v641
        %v650 = vmul.f32 %v635, %v642
        %v651 = vmul.f32 %v618, %v641
        %v652 = vmul.f32 %v637, %v642
        %v653 = vmax.f32 %v645, -64.0
        %v654 = vmax.f32 %v646, -64.0
        %v655 = vmax.f32 %v647, -64.0
        %v656 = vmax.f32 %v648, -64.0
        %v657 = vmax.f32 %v649, -64.0
        %v658 = vmax.f32 %v650, -64.0
        %v659 = vmax.f32 %v651, -64.0
        %v660 = vmax.f32 %v652, -64.0
        %v661 = vmin.f32 %v653, 64.0
        %v662 = vmin.f32 %v654, 64.0
        %v663 = vmin.f32 %v655, 64.0
        %v664 = vmin.f32 %v656, 64.0
        %v665 = vmin.f32 %v657, 64.0
        %v666 = vmin.f32 %v658, 64.0
        %v667 = vmin.f32 %v659, 64.0
        %v668 = vmin.f32 %v660, 64.0
        %s669 = smul.u32 %s24, 256
        %v670 = vstv %s669
        %v671 = vsub.s32 %v457, %v670
        %v672 = vsub.s32 %v458, %v670
        %v673 = vsub.s32 %v459, %v670
        %v674 = vsub.s32 %v460, %v670
        %v675 = vlaneseq
        %v676 = vand.u32 %v675, 127
        %v677 = vadd.s32 %v676, 128
        %678 = vset.pattern.permute.xlu0 0
        %679 = vperm.xlu0 %678, %v671
        %v680 = vpop.permute.xlu0 %679
        %681 = vset.pattern.permute.xlu0 0
        %682 = vperm.xlu0 %681, %v672
        %v683 = vpop.permute.xlu0 %682
        %684 = vset.pattern.permute.xlu0 0
        %685 = vperm.xlu0 %684, %v673
        %v686 = vpop.permute.xlu0 %685
        %687 = vset.pattern.permute.xlu0 0
        %688 = vperm.xlu0 %687, %v674
        %v689 = vpop.permute.xlu0 %688
        %vm690 = vcmp.eq.s32.totalorder %v676, %v680
        %vm691 = vcmp.eq.s32.totalorder %v677, %v680
        %vm692 = vcmp.eq.s32.totalorder %v676, %v683
        %vm693 = vcmp.eq.s32.totalorder %v677, %v683
        %vm694 = vcmp.eq.s32.totalorder %v676, %v686
        %vm695 = vcmp.eq.s32.totalorder %v677, %v686
        %vm696 = vcmp.eq.s32.totalorder %v676, %v689
        %vm697 = vcmp.eq.s32.totalorder %v677, %v689
        %v698 = vsel %vm690, %v661, 0.0
        %v699 = vsel %vm691, %v662, 0.0
        %v700 = vsel %vm692, %v663, 0.0
        %v701 = vsel %vm693, %v664, 0.0
        %v702 = vsel %vm694, %v665, 0.0
        %v703 = vsel %vm695, %v666, 0.0
        %v704 = vsel %vm696, %v667, 0.0
        %v705 = vsel %vm697, %v668, 0.0
        %v706 = vadd.f32 %v698, %v699
        %707 = vadd.xlane.f32.xlu0 %v706
        %v708 = vpop.xlane.xlu0 %707
        %v709 = vadd.f32 %v700, %v701
        %710 = vadd.xlane.f32.xlu0 %v709
        %v711 = vpop.xlane.xlu0 %710
        %v712 = vadd.f32 %v702, %v703
        %713 = vadd.xlane.f32.xlu0 %v712
        %v714 = vpop.xlane.xlu0 %713
        %v715 = vadd.f32 %v704, %v705
        %716 = vadd.xlane.f32.xlu0 %v715
        %v717 = vpop.xlane.xlu0 %716
        %v718 = vmul.f32 %v708, 0.015625
        %v719 = vmul.f32 %v711, 0.015625
        %v720 = vmul.f32 %v714, 0.015625
        %v721 = vmul.f32 %v717, 0.015625
        %v722 = vmul.f32 %v718, %v718
        %v723 = vmul.f32 %v719, %v719
        %v724 = vmul.f32 %v720, %v720
        %v725 = vmul.f32 %v721, %v721
        %v726 = vsub.f32 1.0, %v722
        %v727 = vsub.f32 1.0, %v723
        %v728 = vsub.f32 1.0, %v724
        %v729 = vsub.f32 1.0, %v725
        %v730 = vmax.f32 %v726, 0.0
        %v731 = vmax.f32 %v727, 0.0
        %v732 = vmax.f32 %v728, 0.0
        %v733 = vmax.f32 %v729, 0.0
        %v734 = vrsqrt.pop %v730
        %v735 = vmul.f32 %v734, %v730
        %v736 = vmul.f32 %v735, %v734
        %v737 = vmul.f32 0.5, %v736
        %v738 = vsub.f32 1.5, %v737
        %v739 = vmul.f32 %v734, %v738
        %v740 = vmul.f32 %v730, %v739
        %vm741 = vcmp.eq.f32.partialorder %v730, inf
        %v742 = vsel %vm741, %v730, %v740
        %vm743 = vcmp.eq.f32.partialorder %v730, 0.0
        %v744 = vand.u32 %v730, 2147483648
        %v745 = vsel %vm743, %v744, %v742
        %v746 = vrsqrt.pop %v731
        %v747 = vmul.f32 %v746, %v731
        %v748 = vmul.f32 %v747, %v746
        %v749 = vmul.f32 0.5, %v748
        %v750 = vsub.f32 1.5, %v749
        %v751 = vmul.f32 %v746, %v750
        %v752 = vmul.f32 %v731, %v751
        %vm753 = vcmp.eq.f32.partialorder %v731, inf
        %v754 = vsel %vm753, %v731, %v752
        %vm755 = vcmp.eq.f32.partialorder %v731, 0.0
        %v756 = vand.u32 %v731, 2147483648
        %v757 = vsel %vm755, %v756, %v754
        %v758 = vrsqrt.pop %v732
        %v759 = vmul.f32 %v758, %v732
        %v760 = vmul.f32 %v759, %v758
        %v761 = vmul.f32 0.5, %v760
        %v762 = vsub.f32 1.5, %v761
        %v763 = vmul.f32 %v758, %v762
        %v764 = vmul.f32 %v732, %v763
        %vm765 = vcmp.eq.f32.partialorder %v732, inf
        %v766 = vsel %vm765, %v732, %v764
        %vm767 = vcmp.eq.f32.partialorder %v732, 0.0
        %v768 = vand.u32 %v732, 2147483648
        %v769 = vsel %vm767, %v768, %v766
        %v770 = vrsqrt.pop %v733
        %v771 = vmul.f32 %v770, %v733
        %v772 = vmul.f32 %v771, %v770
        %v773 = vmul.f32 0.5, %v772
        %v774 = vsub.f32 1.5, %v773
        %v775 = vmul.f32 %v770, %v774
        %v776 = vmul.f32 %v733, %v775
        %vm777 = vcmp.eq.f32.partialorder %v733, inf
        %v778 = vsel %vm777, %v733, %v776
        %vm779 = vcmp.eq.f32.partialorder %v733, 0.0
        %v780 = vand.u32 %v733, 2147483648
        %v781 = vsel %vm779, %v780, %v778
        %v782 = vmul.f32 %v718, 0.87758255
        %v783 = vmul.f32 %v719, 0.87758255
        %v784 = vmul.f32 %v720, 0.87758255
        %v785 = vmul.f32 %v721, 0.87758255
        %v786 = vmul.f32 %v745, 0.47942555
        %v787 = vmul.f32 %v757, 0.47942555
        %v788 = vmul.f32 %v769, 0.47942555
        %v789 = vmul.f32 %v781, 0.47942555
        %v790 = vsub.f32 %v782, %v786
        %v791 = vsub.f32 %v783, %v787
        %v792 = vsub.f32 %v784, %v788
        %v793 = vsub.f32 %v785, %v789
        %vm794 = vcmp.gt.f32.partialorder %v718, -0.87758255
        %vm795 = vcmp.gt.f32.partialorder %v719, -0.87758255
        %vm796 = vcmp.gt.f32.partialorder %v720, -0.87758255
        %vm797 = vcmp.gt.f32.partialorder %v721, -0.87758255
        %v798 = vsel %vm794, %v790, %v718
        %v799 = vsel %vm795, %v791, %v719
        %v800 = vsel %vm796, %v792, %v720
        %v801 = vsel %vm797, %v793, %v721
        %v802 = vmul.f32 %v798, 64.0
        %v803 = vmul.f32 %v799, 64.0
        %v804 = vmul.f32 %v800, 64.0
        %v805 = vmul.f32 %v801, 64.0
        %v806 = vsel %vm690, %v802, %v661
        %v807 = vsel %vm691, %v802, %v662
        %v808 = vsel %vm692, %v803, %v663
        %v809 = vsel %vm693, %v803, %v664
        %v810 = vsel %vm694, %v804, %v665
        %v811 = vsel %vm695, %v804, %v666
        %v812 = vsel %vm696, %v805, %v667
        %v813 = vsel %vm697, %v805, %v668
        %814 = vst [vmem:[%s204] sm:$0xff] %v806
        %815 = vst [vmem:[%s204 + $0x8] sm:$0xff] %v807
        %816 = vst [vmem:[%s204 + $0x10] sm:$0xff] %v808
        %817 = vst [vmem:[%s204 + $0x18] sm:$0xff] %v809
        %818 = vst [vmem:[%s204 + $0x20] sm:$0xff] %v810
        %819 = vst [vmem:[%s204 + $0x28] sm:$0xff] %v811
        %820 = vst [vmem:[%s204 + $0x30] sm:$0xff] %v812
        %821 = vst [vmem:[%s204 + $0x38] sm:$0xff] %v813
        %s822 = sand.u32 %s110, 1
        %s823 = scalar_lea.sflag [#allocation6], %s822
        %s824 = sand.u32 %s110, 1
        %s825 = smul.addr %s824, 64
        %s826 = scalar_lea.vmem [#allocation7], %s825
        // Predicated region
        $region41: #{tpu_custom_call.1} parent=31 // pred_check
          %p827 = pneg %p120
        $region42: #{tpu_custom_call.1} parent=31 // pred_check_branch
          %829 = sbr.rel (%p827) target = $region44
        $region43: #{tpu_custom_call.1} parent=31 // pred_region
          %s830 = smul.u32 4, %s25
          %s831 = smul.u32 2, %s24
          %833 = vsyncadd %s823, 0
          %s834 = smul.addr %s830, 4
          %s835 = sadd.s32 %s831, %s834
          %s836 = smul.addr %s835, 8
          %s837 = scalar_lea.hbm %s3, %s836
          %s838 = sshll.u32 %s826, 4
          %s839 = int_to_ptr.vmem [resolvable:$true] %s838
          %s840 = sshll.u32 %s837, 4
          %s841 = int_to_ptr.hbm [resolvable:$true] %s840
          %846 = dma.vmem_to_hbm [thread:$0]  %s839, 1024, %s841, %s823, 256, 512, 16
        $region44: #{tpu_custom_call.1} parent=31 // pred_fallthru
          _
      $region32: #{tpu_custom_call.1} parent=5 // pred_fallthru
        _
      %p847 = scmp.le.s32.totalorder 2, %s15
      // Predicated region
      $region45: #{tpu_custom_call.1} parent=5 // pred_check
        %p848 = pneg %p847
      $region46: #{tpu_custom_call.1} parent=5 // pred_check_branch
        %850 = sbr.rel (%p848) target = $region48
      $region47: #{tpu_custom_call.1} parent=5 // pred_region
        %s851 = ssub.s32 %s15, 2
        // Predicated region
        $region49: #{tpu_custom_call.1} parent=47 // pred_check
          %p852 = pneg %p126
        $region50: #{tpu_custom_call.1} parent=47 // pred_check_branch
          %854 = sbr.rel (%p852) target = $region52
        $region51: #{tpu_custom_call.1} parent=47 // pred_region
          %s855 = sand.u32 %s111, 1
          %s856 = scalar_lea.sflag [#allocation6], %s855
          %s857 = sand.u32 %s111, 1
          %s858 = smul.addr %s857, 64
          %s859 = scalar_lea.vmem [#allocation7], %s858
          %861 = dma.done %s856, 1024
        $region52: #{tpu_custom_call.1} parent=47 // pred_fallthru
          _
      $region48: #{tpu_custom_call.1} parent=5 // pred_fallthru
        _
    $region6: #{tpu_custom_call.1} parent=1 // loop_footer
      %s19 = sadd.s32 1, %s15
    $region7: #{tpu_custom_call.1} parent=1 // loop_footer_branch
      %14 = sbr.rel target = $region3
    $region8: #{tpu_custom_call.1} parent=1 // loop_exit
      _
    %862 = vsyncpa [#allocation5], 1
    %s863 = scalar_lea.sflag [#allocation5], 1
    %864 = vsyncpa %s863, 1
    %865 = vsyncpa [#allocation6], 1
    %s866 = scalar_lea.sflag [#allocation6], 1
    %867 = vsyncpa %s866, 1

</llo_original>
